<compile_context>
chip_gen: v7x
topology: tpu7x:2x2x1
jax: 0.10.0
libtpu: 0.0.40
codegen_flags: <defaults>
</compile_context>

<pallas_src>
import functools

import jax
import jax.numpy as jnp
from jax.experimental import pallas as pl
from jax.experimental.pallas import tpu as pltpu

_MIB = 1024 * 1024


def _round_up(x, m):
    return ((x + m - 1) // m) * m


def _la_ce_kernel(logits_ref, adj_ref, tgt_ref, out_ref, *, n_rows, tile_rows, mask_rows):
    """Single-pass kernel: whole class row per block, grid over batch tiles."""
    z = logits_ref[...].astype(jnp.float32) + adj_ref[...].astype(jnp.float32)   # (TN, C)
    m = jnp.max(z, axis=-1, keepdims=True)                                        # (TN, 1)
    lse = m + jnp.log(jnp.sum(jnp.exp(z - m), axis=-1, keepdims=True))            # (TN, 1)

    # Target logit: (1, C) lane-iota vs (TN, 1) targets; select -> reduction.
    col = jax.lax.broadcasted_iota(jnp.int32, (1, z.shape[-1]), 1)                # (1, C)
    tgt_logit = jnp.sum(jnp.where(col == tgt_ref[...], z, 0.0),
                        axis=-1, keepdims=True)                                   # (TN, 1)

    nll = lse - tgt_logit                                                         # (TN, 1)
    if mask_rows:
        i = pl.program_id(0)
        row = jax.lax.broadcasted_iota(jnp.int32, (tile_rows, 1), 0) + i * tile_rows
        # OOB padded rows may hold inf/NaN; select drops them (no propagation).
        nll = jnp.where(row < n_rows, nll, 0.0)
    out_ref[0] = jnp.sum(nll, axis=0, keepdims=True)                              # (1, 1)


def _la_ce_stream_kernel(logits_ref, adj_ref, tgt_ref, out_ref, m_sc, l_sc, t_sc, *,
                         n_rows, n_cols, tile_rows, tile_cols, mask_rows, mask_cols):
    """Class-tiled streaming-LSE kernel: grid = (batch tiles, class tiles)."""
    i = pl.program_id(0)
    j = pl.program_id(1)

    @pl.when(j == 0)
    def _():
        m_sc[...] = jnp.full_like(m_sc, -jnp.inf)
        l_sc[...] = jnp.zeros_like(l_sc)
        t_sc[...] = jnp.zeros_like(t_sc)

    z = logits_ref[...].astype(jnp.float32) + adj_ref[...].astype(jnp.float32)    # (TN, TC)
    col = jax.lax.broadcasted_iota(jnp.int32, (1, tile_cols), 1) + j * tile_cols  # (1, TC)
    if mask_cols:
        z = jnp.where(col < n_cols, z, -jnp.inf)   # ragged last class tile

    m_prev = m_sc[...]
    m_new = jnp.maximum(m_prev, jnp.max(z, axis=-1, keepdims=True))
    alpha = jnp.exp(m_prev - m_new)                                                # 0 on step 0
    l_sc[...] = alpha * l_sc[...] + jnp.sum(jnp.exp(z - m_new), axis=-1, keepdims=True)
    m_sc[...] = m_new
    # Target class falls in exactly one class tile; accumulate its logit.
    t_sc[...] += jnp.sum(jnp.where(col == tgt_ref[...], z, 0.0), axis=-1, keepdims=True)

    @pl.when(j == pl.num_programs(1) - 1)
    def _():
        nll = m_sc[...] + jnp.log(l_sc[...]) - t_sc[...]                           # (TN, 1)
        if mask_rows:
            row = jax.lax.broadcasted_iota(jnp.int32, (tile_rows, 1), 0) + i * tile_rows
            nll = jnp.where(row < n_rows, nll, 0.0)
        out_ref[0] = jnp.sum(nll, axis=0, keepdims=True)                           # (1, 1)


def la_loss(logits, targets, logits_adj, *,
            vmem_budget_bytes=32 * _MIB,     # conservative: fits v7x 64 MiB with headroom
            vmem_limit_bytes=48 * _MIB,      # above v5e/v6e scoped defaults, below v7x physical
            min_grid_steps=2,                # keep both v7x TCs busy / keep pipelining alive
            class_tile=2048,
            force_class_tiling=False):
    """Pallas equivalent of LALoss.forward -> (loss, None)."""
    N, C = logits.shape
    itemsize = jnp.dtype(logits.dtype).itemsize
    row_mult = 16 if itemsize < 4 else 8      # sublane packing for sub-32-bit inputs

    adj2d = logits_adj.reshape(1, C)
    tgt2d = targets.reshape(N, 1).astype(jnp.int32)

    # VMEM bytes per batch row for a class-block width: double-buffered native
    # input block + ~3 f32 (TN, Cblk) temporaries (z, exp, one-hot select).
    def per_row_bytes(c_blk):
        return c_blk * (2 * itemsize + 12) + 32

    def pick_row_tile(c_blk):
        tn = max(vmem_budget_bytes // per_row_bytes(c_blk), row_mult)
        if min_grid_steps > 1:
            tn = min(tn, _round_up(pl.cdiv(N, min_grid_steps), row_mult))
        if tn >= N:
            return N                           # block dim == full array dim: always legal
        return max(row_mult, (tn // row_mult) * row_mult)

    use_stream = force_class_tiling or (vmem_budget_bytes // per_row_bytes(C) < row_mult)

    if not use_stream:
        TN = pick_row_tile(C)
        num_row_tiles = pl.cdiv(N, TN)
        kernel = functools.partial(_la_ce_kernel, n_rows=N, tile_rows=TN,
                                   mask_rows=(N % TN != 0))
        grid = (num_row_tiles,)
        in_specs = [
            pl.BlockSpec((TN, C), lambda i: (i, 0)),   # logits row tile (native dtype)
            pl.BlockSpec((1, C), lambda i: (0, 0)),    # class-prior adjustment (reused)
            pl.BlockSpec((TN, 1), lambda i: (i, 0)),   # targets row tile
        ]
        out_specs = pl.BlockSpec((1, 1, 1), lambda i: (i, 0, 0))
        scratch_shapes = []
        dim_sem = ("parallel",)
    else:
        TC = min(class_tile, C)
        if TC < C:
            TC = max(128, (TC // 128) * 128)
            if TC >= C:
                TC = C
        TN = pick_row_tile(TC)
        num_row_tiles = pl.cdiv(N, TN)
        num_col_tiles = pl.cdiv(C, TC)
        kernel = functools.partial(
            _la_ce_stream_kernel, n_rows=N, n_cols=C, tile_rows=TN, tile_cols=TC,
            mask_rows=(N % TN != 0), mask_cols=(C % TC != 0))
        grid = (num_row_tiles, num_col_tiles)
        in_specs = [
            pl.BlockSpec((TN, TC), lambda i, j: (i, j)),
            pl.BlockSpec((1, TC), lambda i, j: (0, j)),
            pl.BlockSpec((TN, 1), lambda i, j: (i, 0)),
        ]
        out_specs = pl.BlockSpec((1, 1, 1), lambda i, j: (i, 0, 0))
        scratch_shapes = [pltpu.VMEM((TN, 1), jnp.float32),   # running max
                          pltpu.VMEM((TN, 1), jnp.float32),   # running sum-of-exp
                          pltpu.VMEM((TN, 1), jnp.float32)]   # running target logit
        dim_sem = ("parallel", "arbitrary")

    cost = pl.CostEstimate(
        flops=8 * N * C,
        transcendentals=N * C,
        bytes_accessed=N * C * itemsize
                       + C * jnp.dtype(adj2d.dtype).itemsize
                       + N * 4
                       + num_row_tiles * 4,
    )

    partials = pl.pallas_call(
        kernel,
        out_shape=jax.ShapeDtypeStruct((num_row_tiles, 1, 1), jnp.float32),
        grid=grid,
        in_specs=in_specs,
        out_specs=out_specs,
        scratch_shapes=scratch_shapes,
        compiler_params=pltpu.CompilerParams(
            dimension_semantics=dim_sem,
            vmem_limit_bytes=int(vmem_limit_bytes),
        ),
        cost_estimate=cost,
    )(logits, adj2d, tgt2d)

    loss = jnp.sum(partials) / jnp.float32(N)
    return loss, None


def _reference(logits, targets, logits_adj):
    logp = jax.nn.log_softmax(
        logits.astype(jnp.float32) + logits_adj.astype(jnp.float32)[None, :], axis=-1)
    return -jnp.mean(jnp.take_along_axis(logp, targets[:, None], axis=-1))


if __name__ == "__main__":
    key = jax.random.PRNGKey(0)

    # --- test 1: small batch, single tile, f32 ---
    N, C = 8, 32
    k1, k2, k3 = jax.random.split(key, 3)
    logits = jax.random.normal(k1, (N, C), dtype=jnp.float32)
    targets = jax.random.randint(k2, (N,), 0, C, dtype=jnp.int32)
    logits_adj = jnp.log(jax.nn.softmax(jax.random.normal(k3, (C,), dtype=jnp.float32)))

    loss, _ = la_loss(logits, targets, logits_adj)
    loss = jax.block_until_ready(loss)
    ref = _reference(logits, targets, logits_adj)
    assert jnp.allclose(loss, ref, atol=1e-5, rtol=1e-5), (loss, ref)

    # --- test 2: >=2 grid steps with a remainder row tile (exercises masking) ---
    N2 = 12
    k4, k5 = jax.random.split(k1)
    logits2 = jax.random.normal(k4, (N2, C), dtype=jnp.float32)
    targets2 = jax.random.randint(k5, (N2,), 0, C, dtype=jnp.int32)
    loss2, _ = la_loss(logits2, targets2, logits_adj)
    loss2 = jax.block_until_ready(loss2)
    ref2 = _reference(logits2, targets2, logits_adj)
    assert jnp.allclose(loss2, ref2, atol=1e-5, rtol=1e-5), (loss2, ref2)

    # --- test 3: class-tiled streaming LSE with a ragged last class tile ---
    N3, C3 = 16, 320
    k6, k7, k8 = jax.random.split(k2, 3)
    logits3 = jax.random.normal(k6, (N3, C3), dtype=jnp.float32)
    targets3 = jax.random.randint(k7, (N3,), 0, C3, dtype=jnp.int32)
    adj3 = jnp.log(jax.nn.softmax(jax.random.normal(k8, (C3,), dtype=jnp.float32)))
    loss3, _ = la_loss(logits3, targets3, adj3, force_class_tiling=True, class_tile=128)
    loss3 = jax.block_until_ready(loss3)
    ref3 = _reference(logits3, targets3, adj3)
    assert jnp.allclose(loss3, ref3, atol=1e-5, rtol=1e-5), (loss3, ref3)

    # --- test 4: bf16 logits stay native in HBM, f32 math in-kernel ---
    N4, C4 = 16, 64
    k9, k10 = jax.random.split(k3)
    logits4 = jax.random.normal(k9, (N4, C4), dtype=jnp.bfloat16)
    targets4 = jax.random.randint(k10, (N4,), 0, C4, dtype=jnp.int32)
    adj4 = jnp.log(jax.nn.softmax(jax.random.normal(k8, (C4,), dtype=jnp.float32)))
    loss4, _ = la_loss(logits4, targets4, adj4)
    loss4 = jax.block_until_ready(loss4)
    ref4 = _reference(logits4, targets4, adj4)
    assert jnp.allclose(loss4, ref4, atol=1e-3, rtol=1e-3), (loss4, ref4)

    print("KERNEL_OK")
</pallas_src>

<mosaic_0001>
module attributes {stable_mosaic.version = 11 : i64} {
  func.func @_la_ce_kernel(%arg0: i32, %arg1: memref<8x32xf32, #tpu.memory_space<vmem>>, %arg2: memref<1x32xf32, #tpu.memory_space<vmem>>, %arg3: memref<8x1xi32, #tpu.memory_space<vmem>>, %arg4: memref<1x1x1xf32, #tpu.memory_space<vmem>>) attributes {dimension_semantics = [#tpu.dimension_semantics<parallel>], iteration_bounds = array<i64: 1>, scalar_prefetch = 0 : i64, scratch_operands = 0 : i64, tpu.core_type = #tpu.core_type<tc>, window_params = [{transform_indices = @transform_0, window_bounds = array<i64: 8, 32>}, {pipeline_mode = #tpu.pipeline_mode<synchronous>, transform_indices = @transform_1, window_bounds = array<i64: 1, 32>}, {transform_indices = @transform_2, window_bounds = array<i64: 8, 1>}, {transform_indices = @transform_3, window_bounds = array<i64: 1, 1, 1>}]} {
    %c0 = arith.constant 0 : index
    %c0_0 = arith.constant 0 : index
    %0 = vector.load %arg1[%c0, %c0_0] : memref<8x32xf32, #tpu.memory_space<vmem>>, vector<8x32xf32>
    %c0_1 = arith.constant 0 : index
    %c0_2 = arith.constant 0 : index
    %1 = vector.load %arg2[%c0_1, %c0_2] : memref<1x32xf32, #tpu.memory_space<vmem>>, vector<1x32xf32>
    %2 = vector.broadcast %1 : vector<1x32xf32> to vector<8x32xf32>
    %3 = arith.addf %0, %2 : vector<8x32xf32>
    %cst = arith.constant dense<0xFF800000> : vector<8xf32>
    %4 = vector.multi_reduction <maximumf>, %3, %cst [1] : vector<8x32xf32> to vector<8xf32>
    %5 = vector.shape_cast %4 : vector<8xf32> to vector<8x1xf32>
    %6 = vector.broadcast %5 : vector<8x1xf32> to vector<8x32xf32>
    %7 = arith.subf %3, %6 : vector<8x32xf32>
    %8 = math.exp %7 : vector<8x32xf32>
    %cst_3 = arith.constant dense<0.000000e+00> : vector<8xf32>
    %9 = vector.multi_reduction <add>, %8, %cst_3 [1] : vector<8x32xf32> to vector<8xf32>
    %10 = vector.shape_cast %9 : vector<8xf32> to vector<8x1xf32>
    %11 = math.log %10 : vector<8x1xf32>
    %12 = arith.addf %5, %11 : vector<8x1xf32>
    %13 = tpu.iota {dimensions = array<i32: 1>} : vector<1x32xi32>
    %c0_4 = arith.constant 0 : index
    %c0_5 = arith.constant 0 : index
    %14 = vector.load %arg3[%c0_4, %c0_5] : memref<8x1xi32, #tpu.memory_space<vmem>>, vector<8x1xi32>
    %15 = vector.broadcast %13 : vector<1x32xi32> to vector<8x32xi32>
    %16 = vector.broadcast %14 : vector<8x1xi32> to vector<8x32xi32>
    %17 = arith.cmpi eq, %15, %16 : vector<8x32xi32>
    %cst_6 = arith.constant 0.000000e+00 : f32
    %18 = vector.broadcast %cst_6 : f32 to vector<8x32xf32>
    %19 = arith.select %17, %3, %18 : vector<8x32xi1>, vector<8x32xf32>
    %cst_7 = arith.constant dense<0.000000e+00> : vector<8xf32>
    %20 = vector.multi_reduction <add>, %19, %cst_7 [1] : vector<8x32xf32> to vector<8xf32>
    %21 = vector.shape_cast %20 : vector<8xf32> to vector<8x1xf32>
    %22 = arith.subf %12, %21 : vector<8x1xf32>
    %cst_8 = arith.constant dense<0.000000e+00> : vector<1xf32>
    %23 = vector.multi_reduction <add>, %22, %cst_8 [0] : vector<8x1xf32> to vector<1xf32>
    %24 = vector.shape_cast %23 : vector<1xf32> to vector<1x1xf32>
    %c0_9 = arith.constant 0 : index
    %c0_10 = arith.constant 0 : index
    %c0_11 = arith.constant 0 : index
    %25 = vector.load %arg4[%c0_9, %c0_10, %c0_11] : memref<1x1x1xf32, #tpu.memory_space<vmem>>, vector<1x1x1xf32>
    %26 = vector.shape_cast %25 : vector<1x1x1xf32> to vector<1x1xf32>
    %27 = vector.shape_cast %24 : vector<1x1xf32> to vector<1x1x1xf32>
    tpu.vector_store %arg4[%c0_9, %c0_10, %c0_11], %27 {strides = array<i32>} : memref<1x1x1xf32, #tpu.memory_space<vmem>>, vector<1x1x1xf32>,
    return
  }
  func.func @transform_0(%arg0: i32) -> (i32, i32) {
    %c0_i32 = arith.constant 0 : i32
    %c0_i32_0 = arith.constant 0 : i32
    return %arg0, %c0_i32 : i32, i32
  }
  func.func @transform_1(%arg0: i32) -> (i32, i32) {
    %c0_i32 = arith.constant 0 : i32
    %c0_i32_0 = arith.constant 0 : i32
    %c0_i32_1 = arith.constant 0 : i32
    return %c0_i32, %c0_i32_0 : i32, i32
  }
  func.func @transform_2(%arg0: i32) -> (i32, i32) {
    %c0_i32 = arith.constant 0 : i32
    %c0_i32_0 = arith.constant 0 : i32
    return %arg0, %c0_i32 : i32, i32
  }
  func.func @transform_3(%arg0: i32) -> (i32, i32, i32) {
    %c0_i32 = arith.constant 0 : i32
    %c0_i32_0 = arith.constant 0 : i32
    %c0_i32_1 = arith.constant 0 : i32
    return %arg0, %c0_i32, %c0_i32_0 : i32, i32, i32
  }
}

</mosaic_0001>

<llo_original>
// kernel: tpu_custom_call.1
$region0: #{tpu_custom_call.1}
  #allocation0 [shape = 'u32[]', space=smem, size = 0x4, offset = 0x4, fixed_abs, tag = 'smem constant byte address 0x4 - core index']
  #allocation1 [shape = 'u32[144,128]{1,0:T(1,128)}', space=vmem, size = 0x12000, scoped, tag = 'internal scratch']
  %s0 = inlined_call_operand.vmem [shape: f32[8,32], index: 0, kind: input, shape index: {}]
  %s1 = inlined_call_operand.vmem [shape: f32[1,32], index: 1, kind: input, shape index: {}]
  %s2 = inlined_call_operand.vmem [shape: s32[8,1], index: 2, kind: input, shape index: {}]
  %s3 = inlined_call_operand.hbm [shape: f32[1,1,1], index: 3, kind: output, shape index: {}]
  %s4 = sld [smem:[#allocation0]]
  $region22: #{tpu_custom_call.1} parent=0
    _
  %s6 = ssub.s32 1, %s4
  %s7 = scalar_select 0, %s6, %s4
  $region1: #{tpu_custom_call.1} parent=0
    #allocation2 [shape = 'u8[512]{0}', space=vmem, size = 0x400, scoped, tag = 'output window, operand 0, single buffered']
    #allocation3 [shape = 's32[1]{0}', space=sflag, size = 0x4, scoped, tag = 'scoped memory for tpu_custom_call.1']
    %8 = vsyncpa [#allocation3], 0
    // Predicated region
    $region2: #{tpu_custom_call.1} parent=1 // pred_check
      _
    $region3: #{tpu_custom_call.1} parent=1 // pred_check_branch
      %10 = sbr.rel (0) target = $region5
    $region4: #{tpu_custom_call.1} parent=1 // pred_region
      _
    $region5: #{tpu_custom_call.1} parent=1 // pred_fallthru
      _
    // Predicated region
    $region6: #{tpu_custom_call.1} parent=1 // pred_check
      _
    $region7: #{tpu_custom_call.1} parent=1 // pred_check_branch
      %12 = sbr.rel (0) target = $region9
    $region8: #{tpu_custom_call.1} parent=1 // pred_region
      _
    $region9: #{tpu_custom_call.1} parent=1 // pred_fallthru
      _
    // Predicated region
    $region10: #{tpu_custom_call.1} parent=1 // pred_check
      _
    $region11: #{tpu_custom_call.1} parent=1 // pred_check_branch
      %14 = sbr.rel (0) target = $region13
    $region12: #{tpu_custom_call.1} parent=1 // pred_region
      _
    $region13: #{tpu_custom_call.1} parent=1 // pred_fallthru
      _
    %v15 = vld [vmem:[%s0] sm:$0xff]
    %v16 = vld [vmem:[%s1] sm:$0x1]
    %v18 = vlaneseq
    %v19 = vshrl.u32 %v18, 7
    %v20 = vsub.s32 0, %v19
    %v21 = vrot.slane %v16, %v20
    %v23 = vadd.f32 %v15, %v21
    %vm24 = vcmask 261120
    %v25 = vsel %vm24, %v23, -inf
    %26 = vmax.xlane.f32.xlu0 %v25
    %v27 = vpop.xlane.xlu0 %26
    %v28 = vsub.f32 %v23, %v27
    %v29 = vmul.f32 %v28, 1.442695
    %v30 = vpow.pop %v29
    %v31 = vsel %vm24, %v30, 0.0
    %32 = vadd.xlane.f32.xlu0 %v31
    %v33 = vpop.xlane.xlu0 %32
    %v34 = vlog2.pop %v33
    %v35 = vmul.f32 %v34, 0.6931472
    %v36 = vadd.f32 %v27, %v35
    %v37 = vlaneseq
    %v38 = vand.u32 %v37, 127
    %v39 = vld [vmem:[%s2] sm:$0xff]
    %40 = vset.pattern.permute.xlu0 0
    %41 = vperm.xlu0 %40, %v39
    %v42 = vpop.permute.xlu0 %41
    %vm43 = vcmp.eq.s32.totalorder %v38, %v42
    %v44 = vsel %vm43, %v23, 0.0
    %v45 = vsel %vm24, %v44, 0.0
    %46 = vadd.xlane.f32.xlu0 %v45
    %v47 = vpop.xlane.xlu0 %46
    %v48 = vsub.f32 %v36, %v47
    %v49 = vrot.slane %v48, 4
    %v50 = vadd.f32 %v48, %v49
    %v51 = vrot.slane %v50, 2
    %v52 = vadd.f32 %v50, %v51
    %v53 = vrot.slane %v52, 1
    %v54 = vadd.f32 %v52, %v53
    %vm55 = vcmask 0
    %56 = vst.msk [vmem:[#allocation2] sm:$0x1] %vm55, %v54
    // Predicated region
    $region14: #{tpu_custom_call.1} parent=1 // pred_check
      _
    $region15: #{tpu_custom_call.1} parent=1 // pred_check_branch
      %58 = sbr.rel (0) target = $region17
    $region16: #{tpu_custom_call.1} parent=1 // pred_region
      %s60 = ssub.s32 16, 16
      %61 = vsyncadd [#allocation3], %s60
      %s63 = sshll.u32 [#allocation2], 4
      %s64 = int_to_ptr.vmem [resolvable:$true] %s63
      %66 = dma.vmem_to_hbm [thread:$0]  %s64, 16, %s3, [#allocation3]
    $region17: #{tpu_custom_call.1} parent=1 // pred_fallthru
      _
    // Predicated region
    $region18: #{tpu_custom_call.1} parent=1 // pred_check
      _
    $region19: #{tpu_custom_call.1} parent=1 // pred_check_branch
      %68 = sbr.rel (0) target = $region21
    $region20: #{tpu_custom_call.1} parent=1 // pred_region
      %69 = dma.done [#allocation3], 16
    $region21: #{tpu_custom_call.1} parent=1 // pred_fallthru
      _
    %70 = vsyncpa [#allocation3], 1

</llo_original>
